<compile_context>
chip_gen: v7x
topology: tpu7x:2x2x1
jax: 0.10.0
libtpu: 0.0.40
codegen_flags: <defaults>
</compile_context>

<pallas_src>
import functools

import jax
import jax.numpy as jnp
from jax.experimental import pallas as pl
from jax.experimental.pallas import tpu as pltpu

IGNORE_INDEX = 255


def _focal_kernel(x_ref, lab_ref, out_ref, acc_ref, *,
                  hw, s_block, n_inner, num_classes, gamma, ignore_index):
    p = pl.program_id(1)
    t = pl.program_id(2)

    @pl.when(t == 0)
    def _init():
        acc_ref[...] = jnp.zeros_like(acc_ref)

    lab = lab_ref[0, 0].astype(jnp.int32)              # (S, 128)

    # Validity mask from the *unclamped* chunk index: ragged tails, padded
    # pixels and phantom chunks (odd split) all contribute exactly zero.
    chunk = p * n_inner + t
    row0 = chunk * s_block
    sub = jax.lax.broadcasted_iota(jnp.int32, lab.shape, 0)
    lane = jax.lax.broadcasted_iota(jnp.int32, lab.shape, 1)
    pix = (row0 + sub) * 128 + lane
    valid = jnp.logical_and(pix < hw, lab != ignore_index)

    # Pass 1: running max over classes (pure VPU, pixels fill every sublane).
    m = x_ref[0, 0].astype(jnp.float32)
    for c in range(1, num_classes):
        m = jnp.maximum(m, x_ref[0, c].astype(jnp.float32))

    # Pass 2: sum-exp + select-gather of the target-class logit and its exp.
    se = jnp.zeros_like(m)
    x_at = jnp.zeros_like(m)
    ex_at = jnp.zeros_like(m)
    for c in range(num_classes):
        xc = x_ref[0, c].astype(jnp.float32)
        e = jnp.exp(xc - m)
        se = se + e
        hit = lab == c
        x_at = jnp.where(hit, xc, x_at)
        ex_at = jnp.where(hit, e, ex_at)

    logpt = m + jnp.log(se) - x_at                      # per-pixel CE
    # softmax prob of the target class; replaces exp(-logpt) with a near-free
    # vrcp (flip approx=False if exact f32 is required).
    pt = ex_at * pl.reciprocal(se, approx=True)
    focal = (1.0 - pt) ** gamma * logpt                 # int gamma -> multiplies

    # Select (not multiply) so garbage in invalid lanes can never propagate.
    acc_ref[...] += jnp.where(valid, focal, 0.0)

    @pl.when(t == n_inner - 1)
    def _finalize():
        total = jnp.sum(acc_ref[...])
        out_ref[...] = jnp.broadcast_to(total, out_ref.shape)


@functools.partial(jax.jit,
                   static_argnames=("gamma", "ignore_index", "size_average"))
def focal_loss(logits, labels, gamma=2, ignore_index=IGNORE_INDEX,
               size_average=True):
    """logits: (N, C, H, W) float; labels: (N, H, W) int. Returns scalar loss."""
    # TODO(synk): per-class alpha weights (CrossEntropyLoss weight=) not
    # implemented; this is the module's default alpha=None path.
    N, C, H, W = logits.shape
    HW = H * W

    # Keep gamma a static Python int so the power lowers to 1-2 VPU multiplies.
    if isinstance(gamma, float) and float(gamma).is_integer():
        gamma = int(gamma)

    # Stream labels in their native narrow int dtype (uint8 is ideal on v5e);
    # only widen when necessary.  Upcast to int32 happens in-kernel.
    if labels.dtype.itemsize > 4 or not jnp.issubdtype(labels.dtype, jnp.integer):
        labels = labels.astype(jnp.int32)

    HW_pad = ((HW + 127) // 128) * 128
    x = logits.reshape(N, C, HW)                # free views of contiguous NCHW
    lab = labels.reshape(N, 1, HW)
    if HW_pad != HW:
        # TODO(synk): rare ragged case costs one extra HBM pass; a divisor-tiled
        # layout would avoid it.  Correctness is kept by the in-kernel pix<HW mask.
        x = jnp.pad(x, ((0, 0), (0, 0), (0, HW_pad - HW)))
        lab = jnp.pad(lab, ((0, 0), (0, 0), (0, HW_pad - HW)))
    s_total = HW_pad // 128
    x = x.reshape(N, C, s_total, 128)           # pixels on sublanes AND lanes
    lab = lab.reshape(N, 1, s_total, 128)

    # ~2 MiB of f32-equivalent logits per grid step: amortizes the ~0.35us
    # per-step overhead while bounding f32 intermediates well under VMEM.
    rows = max(8, ((2 * 1024 * 1024) // (C * 128 * 4)) // 8 * 8)
    s_block = s_total if s_total <= rows else rows
    n_chunks = (s_total + s_block - 1) // s_block

    # 2-way parallel split of the pixel axis keeps both v7x TensorCores busy
    # even at N=1; a no-op on single-TC v5e/v6e.
    num_splits = 2 if n_chunks >= 2 else 1
    n_inner = (n_chunks + num_splits - 1) // num_splits

    def in_map(n, p, t):
        # Clamp phantom chunks (odd n_chunks) into range; the kernel's
        # unclamped-pix mask makes them contribute exactly zero.
        return (n, 0, jnp.minimum(p * n_inner + t, n_chunks - 1), 0)

    kernel = functools.partial(
        _focal_kernel, hw=HW, s_block=s_block, n_inner=n_inner,
        num_classes=C, gamma=gamma, ignore_index=ignore_index)

    partials = pl.pallas_call(
        kernel,
        out_shape=jax.ShapeDtypeStruct((N, num_splits, 8, 128), jnp.float32),
        grid_spec=pltpu.PrefetchScalarGridSpec(
            num_scalar_prefetch=0,
            grid=(N, num_splits, n_inner),
            in_specs=[
                pl.BlockSpec((1, C, s_block, 128), in_map),
                pl.BlockSpec((1, 1, s_block, 128), in_map),
            ],
            out_specs=pl.BlockSpec((1, 1, 8, 128), lambda n, p, t: (n, p, 0, 0)),
            scratch_shapes=[pltpu.VMEM((s_block, 128), jnp.float32)],
        ),
        compiler_params=pltpu.CompilerParams(
            dimension_semantics=("parallel", "parallel", "arbitrary"),
            # Sized for v7x's 64 MiB physical VMEM; v5e/v6e have headroom to spare.
            vmem_limit_bytes=32 * 1024 * 1024,
        ),
    )(x, lab)

    total = jnp.sum(partials[:, :, 0, 0])
    if size_average:
        # PyTorch semantics: CE_loss(reduce=False, ignore_index=...) zeroes the
        # ignored pixels but loss.mean() still divides by N*H*W.
        return total / (N * H * W)
    return total


def _reference_focal(logits, labels, gamma=2, ignore_index=IGNORE_INDEX,
                     size_average=True):
    """Pure-JAX reference matching the PyTorch FocalLoss forward."""
    logits = logits.astype(jnp.float32)
    C = logits.shape[1]
    logp = jax.nn.log_softmax(logits, axis=1)
    valid = labels != ignore_index
    lab_safe = jnp.where(valid, labels, 0)
    oh = jax.nn.one_hot(lab_safe, C, axis=1, dtype=jnp.float32)
    ce = -jnp.sum(logp * oh, axis=1)
    ce = jnp.where(valid, ce, 0.0)
    pt = jnp.exp(-ce)
    loss = (1.0 - pt) ** gamma * ce
    return loss.mean() if size_average else loss.sum()


if __name__ == "__main__":
    key = jax.random.PRNGKey(0)
    k1, k2 = jax.random.split(key)

    N, C, H, W = 2, 4, 16, 16
    logits = jax.random.normal(k1, (N, C, H, W), dtype=jnp.float32)
    labels = jax.random.randint(k2, (N, H, W), 0, C, dtype=jnp.int32)
    # a couple of ignore_index pixels to exercise the masking path
    labels = labels.at[0, 0, 0].set(IGNORE_INDEX).at[1, 3, 7].set(IGNORE_INDEX)

    loss = jax.block_until_ready(focal_loss(logits, labels))
    ref = _reference_focal(logits, labels)
    # approx-reciprocal pt path -> a few 1e-4 relative; well inside 2e-3.
    assert jnp.allclose(loss, ref, rtol=2e-3, atol=2e-3), (loss, ref)

    print("KERNEL_OK")
</pallas_src>

<mosaic_0001>
module attributes {stable_mosaic.version = 11 : i64} {
  func.func @_focal_kernel(%arg0: i32, %arg1: i32, %arg2: i32, %arg3: memref<1x4x2x128xf32, #tpu.memory_space<vmem>>, %arg4: memref<1x1x2x128xi32, #tpu.memory_space<vmem>>, %arg5: memref<1x1x8x128xf32, #tpu.memory_space<vmem>>, %arg6: memref<2x128xf32, #tpu.memory_space<vmem>>) attributes {dimension_semantics = [#tpu.dimension_semantics<parallel>, #tpu.dimension_semantics<parallel>, #tpu.dimension_semantics<arbitrary>], iteration_bounds = array<i64: 2, 1, 1>, scalar_prefetch = 0 : i64, scratch_operands = 1 : i64, tpu.core_type = #tpu.core_type<tc>, window_params = [{transform_indices = @transform_0, window_bounds = array<i64: 1, 4, 2, 128>}, {transform_indices = @transform_1, window_bounds = array<i64: 1, 1, 2, 128>}, {transform_indices = @transform_2, window_bounds = array<i64: 1, 1, 8, 128>}]} {
    %c0_i32 = arith.constant 0 : i32
    %0 = arith.cmpi eq, %arg2, %c0_i32 : i32
    %1 = arith.extui %0 : i1 to i32
    %c0_i32_0 = arith.constant 0 : i32
    %2 = arith.cmpi ne, %1, %c0_i32_0 : i32
    scf.if %2 {
      %cst_46 = arith.constant 0.000000e+00 : f32
      %87 = vector.broadcast %cst_46 : f32 to vector<2x128xf32>
      %c0_47 = arith.constant 0 : index
      %c0_48 = arith.constant 0 : index
      %88 = vector.load %arg6[%c0_47, %c0_48] : memref<2x128xf32, #tpu.memory_space<vmem>>, vector<2x128xf32>
      tpu.vector_store %arg6[%c0_47, %c0_48], %87 {strides = array<i32>} : memref<2x128xf32, #tpu.memory_space<vmem>>, vector<2x128xf32>,
    } else {
    }
    %c0 = arith.constant 0 : index
    %c0_1 = arith.constant 0 : index
    %c0_2 = arith.constant 0 : index
    %c0_3 = arith.constant 0 : index
    %3 = vector.load %arg4[%c0, %c0_1, %c0_2, %c0_3] : memref<1x1x2x128xi32, #tpu.memory_space<vmem>>, vector<1x1x2x128xi32>
    %4 = vector.shape_cast %3 : vector<1x1x2x128xi32> to vector<2x128xi32>
    %c1_i32 = arith.constant 1 : i32
    %5 = arith.muli %arg1, %c1_i32 : i32
    %6 = arith.addi %5, %arg2 : i32
    %c2_i32 = arith.constant 2 : i32
    %7 = arith.muli %6, %c2_i32 : i32
    %8 = tpu.iota {dimensions = array<i32: 0>} : vector<2x128xi32>
    %9 = tpu.iota {dimensions = array<i32: 1>} : vector<2x128xi32>
    %10 = vector.broadcast %7 : i32 to vector<2x128xi32>
    %11 = arith.addi %10, %8 : vector<2x128xi32>
    %c128_i32 = arith.constant 128 : i32
    %12 = vector.broadcast %c128_i32 : i32 to vector<2x128xi32>
    %13 = arith.muli %11, %12 : vector<2x128xi32>
    %14 = arith.addi %13, %9 : vector<2x128xi32>
    %c256_i32 = arith.constant 256 : i32
    %15 = vector.broadcast %c256_i32 : i32 to vector<2x128xi32>
    %16 = arith.cmpi slt, %14, %15 : vector<2x128xi32>
    %c255_i32 = arith.constant 255 : i32
    %17 = vector.broadcast %c255_i32 : i32 to vector<2x128xi32>
    %18 = arith.cmpi ne, %4, %17 : vector<2x128xi32>
    %19 = arith.andi %16, %18 : vector<2x128xi1>
    %c0_4 = arith.constant 0 : index
    %c0_5 = arith.constant 0 : index
    %c0_6 = arith.constant 0 : index
    %c0_7 = arith.constant 0 : index
    %20 = vector.load %arg3[%c0_4, %c0_5, %c0_6, %c0_7] : memref<1x4x2x128xf32, #tpu.memory_space<vmem>>, vector<1x1x2x128xf32>
    %21 = vector.shape_cast %20 : vector<1x1x2x128xf32> to vector<2x128xf32>
    %c0_8 = arith.constant 0 : index
    %c1 = arith.constant 1 : index
    %c0_9 = arith.constant 0 : index
    %c0_10 = arith.constant 0 : index
    %22 = vector.load %arg3[%c0_8, %c1, %c0_9, %c0_10] : memref<1x4x2x128xf32, #tpu.memory_space<vmem>>, vector<1x1x2x128xf32>
    %23 = vector.shape_cast %22 : vector<1x1x2x128xf32> to vector<2x128xf32>
    %24 = arith.maximumf %21, %23 : vector<2x128xf32>
    %c0_11 = arith.constant 0 : index
    %c2 = arith.constant 2 : index
    %c0_12 = arith.constant 0 : index
    %c0_13 = arith.constant 0 : index
    %25 = vector.load %arg3[%c0_11, %c2, %c0_12, %c0_13] : memref<1x4x2x128xf32, #tpu.memory_space<vmem>>, vector<1x1x2x128xf32>
    %26 = vector.shape_cast %25 : vector<1x1x2x128xf32> to vector<2x128xf32>
    %27 = arith.maximumf %24, %26 : vector<2x128xf32>
    %c0_14 = arith.constant 0 : index
    %c3 = arith.constant 3 : index
    %c0_15 = arith.constant 0 : index
    %c0_16 = arith.constant 0 : index
    %28 = vector.load %arg3[%c0_14, %c3, %c0_15, %c0_16] : memref<1x4x2x128xf32, #tpu.memory_space<vmem>>, vector<1x1x2x128xf32>
    %29 = vector.shape_cast %28 : vector<1x1x2x128xf32> to vector<2x128xf32>
    %30 = arith.maximumf %27, %29 : vector<2x128xf32>
    %cst = arith.constant 0.000000e+00 : f32
    %31 = vector.broadcast %cst : f32 to vector<2x128xf32>
    %cst_17 = arith.constant 0.000000e+00 : f32
    %32 = vector.broadcast %cst_17 : f32 to vector<2x128xf32>
    %cst_18 = arith.constant 0.000000e+00 : f32
    %33 = vector.broadcast %cst_18 : f32 to vector<2x128xf32>
    %c0_19 = arith.constant 0 : index
    %c0_20 = arith.constant 0 : index
    %c0_21 = arith.constant 0 : index
    %c0_22 = arith.constant 0 : index
    %34 = vector.load %arg3[%c0_19, %c0_20, %c0_21, %c0_22] : memref<1x4x2x128xf32, #tpu.memory_space<vmem>>, vector<1x1x2x128xf32>
    %35 = vector.shape_cast %34 : vector<1x1x2x128xf32> to vector<2x128xf32>
    %36 = arith.subf %35, %30 : vector<2x128xf32>
    %37 = math.exp %36 : vector<2x128xf32>
    %38 = arith.addf %31, %37 : vector<2x128xf32>
    %c0_i32_23 = arith.constant 0 : i32
    %39 = vector.broadcast %c0_i32_23 : i32 to vector<2x128xi32>
    %40 = arith.cmpi eq, %4, %39 : vector<2x128xi32>
    %41 = arith.select %40, %35, %32 : vector<2x128xi1>, vector<2x128xf32>
    %42 = arith.select %40, %37, %33 : vector<2x128xi1>, vector<2x128xf32>
    %c0_24 = arith.constant 0 : index
    %c1_25 = arith.constant 1 : index
    %c0_26 = arith.constant 0 : index
    %c0_27 = arith.constant 0 : index
    %43 = vector.load %arg3[%c0_24, %c1_25, %c0_26, %c0_27] : memref<1x4x2x128xf32, #tpu.memory_space<vmem>>, vector<1x1x2x128xf32>
    %44 = vector.shape_cast %43 : vector<1x1x2x128xf32> to vector<2x128xf32>
    %45 = arith.subf %44, %30 : vector<2x128xf32>
    %46 = math.exp %45 : vector<2x128xf32>
    %47 = arith.addf %38, %46 : vector<2x128xf32>
    %c1_i32_28 = arith.constant 1 : i32
    %48 = vector.broadcast %c1_i32_28 : i32 to vector<2x128xi32>
    %49 = arith.cmpi eq, %4, %48 : vector<2x128xi32>
    %50 = arith.select %49, %44, %41 : vector<2x128xi1>, vector<2x128xf32>
    %51 = arith.select %49, %46, %42 : vector<2x128xi1>, vector<2x128xf32>
    %c0_29 = arith.constant 0 : index
    %c2_30 = arith.constant 2 : index
    %c0_31 = arith.constant 0 : index
    %c0_32 = arith.constant 0 : index
    %52 = vector.load %arg3[%c0_29, %c2_30, %c0_31, %c0_32] : memref<1x4x2x128xf32, #tpu.memory_space<vmem>>, vector<1x1x2x128xf32>
    %53 = vector.shape_cast %52 : vector<1x1x2x128xf32> to vector<2x128xf32>
    %54 = arith.subf %53, %30 : vector<2x128xf32>
    %55 = math.exp %54 : vector<2x128xf32>
    %56 = arith.addf %47, %55 : vector<2x128xf32>
    %c2_i32_33 = arith.constant 2 : i32
    %57 = vector.broadcast %c2_i32_33 : i32 to vector<2x128xi32>
    %58 = arith.cmpi eq, %4, %57 : vector<2x128xi32>
    %59 = arith.select %58, %53, %50 : vector<2x128xi1>, vector<2x128xf32>
    %60 = arith.select %58, %55, %51 : vector<2x128xi1>, vector<2x128xf32>
    %c0_34 = arith.constant 0 : index
    %c3_35 = arith.constant 3 : index
    %c0_36 = arith.constant 0 : index
    %c0_37 = arith.constant 0 : index
    %61 = vector.load %arg3[%c0_34, %c3_35, %c0_36, %c0_37] : memref<1x4x2x128xf32, #tpu.memory_space<vmem>>, vector<1x1x2x128xf32>
    %62 = vector.shape_cast %61 : vector<1x1x2x128xf32> to vector<2x128xf32>
    %63 = arith.subf %62, %30 : vector<2x128xf32>
    %64 = math.exp %63 : vector<2x128xf32>
    %65 = arith.addf %56, %64 : vector<2x128xf32>
    %c3_i32 = arith.constant 3 : i32
    %66 = vector.broadcast %c3_i32 : i32 to vector<2x128xi32>
    %67 = arith.cmpi eq, %4, %66 : vector<2x128xi32>
    %68 = arith.select %67, %62, %59 : vector<2x128xi1>, vector<2x128xf32>
    %69 = arith.select %67, %64, %60 : vector<2x128xi1>, vector<2x128xf32>
    %70 = math.log %65 : vector<2x128xf32>
    %71 = arith.addf %30, %70 : vector<2x128xf32>
    %72 = arith.subf %71, %68 : vector<2x128xf32>
    %73 = tpu.reciprocal %65 {approx = true} : vector<2x128xf32> -> vector<2x128xf32>
    %74 = arith.mulf %69, %73 : vector<2x128xf32>
    %cst_38 = arith.constant 1.000000e+00 : f32
    %75 = vector.broadcast %cst_38 : f32 to vector<2x128xf32>
    %76 = arith.subf %75, %74 : vector<2x128xf32>
    %77 = arith.mulf %76, %76 : vector<2x128xf32>
    %78 = arith.mulf %77, %72 : vector<2x128xf32>
    %c0_39 = arith.constant 0 : index
    %c0_40 = arith.constant 0 : index
    %79 = vector.load %arg6[%c0_39, %c0_40] : memref<2x128xf32, #tpu.memory_space<vmem>>, vector<2x128xf32>
    %cst_41 = arith.constant 0.000000e+00 : f32
    %80 = vector.broadcast %cst_41 : f32 to vector<2x128xf32>
    %81 = arith.select %19, %78, %80 : vector<2x128xi1>, vector<2x128xf32>
    %82 = arith.addf %79, %81 : vector<2x128xf32>
    %c0_42 = arith.constant 0 : index
    %c0_43 = arith.constant 0 : index
    %83 = vector.load %arg6[%c0_42, %c0_43] : memref<2x128xf32, #tpu.memory_space<vmem>>, vector<2x128xf32>
    tpu.vector_store %arg6[%c0_42, %c0_43], %82 {strides = array<i32>} : memref<2x128xf32, #tpu.memory_space<vmem>>, vector<2x128xf32>,
    %c0_i32_44 = arith.constant 0 : i32
    %84 = arith.cmpi eq, %arg2, %c0_i32_44 : i32
    %85 = arith.extui %84 : i1 to i32
    %c0_i32_45 = arith.constant 0 : i32
    %86 = arith.cmpi ne, %85, %c0_i32_45 : i32
    scf.if %86 {
      %c0_46 = arith.constant 0 : index
      %c0_47 = arith.constant 0 : index
      %87 = vector.load %arg6[%c0_46, %c0_47] : memref<2x128xf32, #tpu.memory_space<vmem>>, vector<2x128xf32>
      %88 = vector.shape_cast %87 : vector<2x128xf32> to vector<1x2x128xf32>
      %cst_48 = arith.constant dense<0.000000e+00> : vector<1xf32>
      %89 = vector.multi_reduction <add>, %88, %cst_48 [1, 2] : vector<1x2x128xf32> to vector<1xf32>
      %90 = vector.shape_cast %89 : vector<1xf32> to vector<1x1x1xf32>
      %91 = vector.extract %90[0, 0, 0] : f32 from vector<1x1x1xf32>
      %92 = vector.broadcast %91 : f32 to vector<1x1x8x128xf32>
      %c0_49 = arith.constant 0 : index
      %c0_50 = arith.constant 0 : index
      %c0_51 = arith.constant 0 : index
      %c0_52 = arith.constant 0 : index
      %93 = vector.load %arg5[%c0_49, %c0_50, %c0_51, %c0_52] : memref<1x1x8x128xf32, #tpu.memory_space<vmem>>, vector<1x1x8x128xf32>
      tpu.vector_store %arg5[%c0_49, %c0_50, %c0_51, %c0_52], %92 {strides = array<i32>} : memref<1x1x8x128xf32, #tpu.memory_space<vmem>>, vector<1x1x8x128xf32>,
    } else {
    }
    return
  }
  func.func @transform_0(%arg0: i32, %arg1: i32, %arg2: i32) -> (i32, i32, i32, i32) {
    %c1_i32 = arith.constant 1 : i32
    %0 = arith.muli %arg1, %c1_i32 : i32
    %1 = arith.addi %0, %arg2 : i32
    %c0_i32 = arith.constant 0 : i32
    %2 = arith.minsi %1, %c0_i32 : i32
    %c0_i32_0 = arith.constant 0 : i32
    %c0_i32_1 = arith.constant 0 : i32
    %c0_i32_2 = arith.constant 0 : i32
    return %arg0, %c0_i32_0, %2, %c0_i32_1 : i32, i32, i32, i32
  }
  func.func @transform_1(%arg0: i32, %arg1: i32, %arg2: i32) -> (i32, i32, i32, i32) {
    %c1_i32 = arith.constant 1 : i32
    %0 = arith.muli %arg1, %c1_i32 : i32
    %1 = arith.addi %0, %arg2 : i32
    %c0_i32 = arith.constant 0 : i32
    %2 = arith.minsi %1, %c0_i32 : i32
    %c0_i32_0 = arith.constant 0 : i32
    %c0_i32_1 = arith.constant 0 : i32
    %c0_i32_2 = arith.constant 0 : i32
    return %arg0, %c0_i32_0, %2, %c0_i32_1 : i32, i32, i32, i32
  }
  func.func @transform_2(%arg0: i32, %arg1: i32, %arg2: i32) -> (i32, i32, i32, i32) {
    %c0_i32 = arith.constant 0 : i32
    %c0_i32_0 = arith.constant 0 : i32
    %c0_i32_1 = arith.constant 0 : i32
    return %arg0, %arg1, %c0_i32, %c0_i32_0 : i32, i32, i32, i32
  }
}

</mosaic_0001>

<llo_original>
// kernel: focal_loss.1
$region0: #{focal_loss.1}
  #allocation0 [shape = 'u32[]', space=smem, size = 0x4, offset = 0x4, fixed_abs, tag = 'smem constant byte address 0x4 - core index']
  #allocation1 [shape = 'u32[144,128]{1,0:T(1,128)}', space=vmem, size = 0x12000, scoped, tag = 'internal scratch']
  #allocation2 [shape = 'f32[2,128]{1,0:T(2,128)}', space=vmem, size = 0x400, scoped, tag = 'scratch operand']
  %s0 = inlined_call_operand.vmem [shape: f32[2,4,2,128], index: 0, kind: input, shape index: {}]
  %s1 = inlined_call_operand.vmem [shape: s32[2,1,2,128], index: 1, kind: input, shape index: {}]
  %s2 = inlined_call_operand.vmem [shape: f32[2,1,8,128], index: 2, kind: output, shape index: {}]
  %s3 = sld [smem:[#allocation0]]
  $region49: #{focal_loss.1} parent=0
    _
  %s5 = ssub.s32 1, %s3
  %s6 = scalar_select 0, %s5, %s3
  loop: start=0, step=1, limit=4
  $region2: #{focal_loss.1} parent=0 // loop_pre_header
    _
  $region3: #{focal_loss.1} parent=0 // loop_header
    %s8 = sphi 0, %s12
    %p9 = scmp.ge.s32.totalorder %s8, 4
    %s15 = sphi 0, %s34
    %s16 = sphi 0, %s30
    %s17 = sphi 0, %s26
    %s18 = sphi 0, %s15
    %s19 = sphi 0, %s16
    %s20 = sphi 0, %s17
    %s21 = sphi 0, %s18
    %s22 = sphi 0, %s19
    %s23 = sphi 0, %s20
    %s45 = sphi 0, %s47
    %s48 = sphi 0, %s45
    %s49 = sphi 0, %s48
    %s65 = sphi 0, %s49
    %s79 = sphi 0, %s81
    %s82 = sphi 0, %s79
    %s83 = sphi 0, %s82
    %s99 = sphi 0, %s83
    %s107 = sphi 0, %s109
    %s110 = sphi 0, %s107
    %s111 = sphi 0, %s110
    %s127 = sphi 0, %s111
  $region4: #{focal_loss.1} parent=0 // loop_header_branch
    %11 = sbr.rel (%p9) target = $region8
  $region5: #{focal_loss.1} parent=0 // loop_body
    %s13 = ssub.s32 %s8, 1
    %s14 = ssub.s32 %s8, 2
    %s24 = sadd.s32 1, %s17
    %p25 = scmp.ge.s32.totalorder %s24, 1
    %s26 = scalar_select %p25, 0, %s24
    %s27 = sadd.s32 1, %s16
    %s28 = scalar_select %p25, %s27, %s16
    %p29 = scmp.ge.s32.totalorder %s28, 1
    %s30 = scalar_select %p29, 0, %s28
    %s31 = sadd.s32 1, %s15
    %s32 = scalar_select %p29, %s31, %s15
    %p33 = scmp.ge.s32.totalorder %s32, 2
    %s34 = scalar_select %p33, 0, %s32
    %s35 = sadd.s32 %s16, %s17
    %p36 = scmp.lt.s32.totalorder %s35, 0
    %s37 = scalar_select %p36, %s35, 0
    %s38 = sadd.s32 %s30, %s26
    %p39 = scmp.lt.s32.totalorder %s38, 0
    %s40 = scalar_select %p39, %s38, 0
    %s41 = ssub.s32 %s15, %s34
    %s42 = ssub.s32 %s37, %s40
    %s43 = sor.u32 %s41, %s42
    %p44 = scmp.eq.s32.totalorder %s43, 0
    %s46 = sadd.s32 %s45, 1
    %s47 = scalar_select %p44, %s45, %s46
    %p50 = pneg %p44
    %p51 = scmp.eq.s32.totalorder %s8, 1
    %p52 = por %p50, %p51
    %p53 = scmp.ne.s32.totalorder %s45, %s48
    %p54 = scmp.eq.s32.totalorder %s8, 0
    %p55 = por %p53, %p54
    %p56 = scmp.ne.s32.totalorder %s45, %s48
    %p57 = scmp.eq.s32.totalorder %s13, 1
    %p58 = por %p56, %p57
    %p59 = scmp.ne.s32.totalorder %s48, %s49
    %p60 = scmp.eq.s32.totalorder %s13, 0
    %p61 = por %p59, %p60
    %p62 = scmp.ne.s32.totalorder %s48, %s49
    %p63 = scmp.eq.s32.totalorder %s14, 1
    %p64 = por %p62, %p63
    %p66 = scmp.ne.s32.totalorder %s49, %s65
    %p67 = scmp.eq.s32.totalorder %s14, 0
    %p68 = por %p66, %p67
    %s69 = sadd.s32 %s16, %s17
    %p70 = scmp.lt.s32.totalorder %s69, 0
    %s71 = scalar_select %p70, %s69, 0
    %s72 = sadd.s32 %s30, %s26
    %p73 = scmp.lt.s32.totalorder %s72, 0
    %s74 = scalar_select %p73, %s72, 0
    %s75 = ssub.s32 %s15, %s34
    %s76 = ssub.s32 %s71, %s74
    %s77 = sor.u32 %s75, %s76
    %p78 = scmp.eq.s32.totalorder %s77, 0
    %s80 = sadd.s32 %s79, 1
    %s81 = scalar_select %p78, %s79, %s80
    %p84 = pneg %p78
    %p85 = scmp.eq.s32.totalorder %s8, 1
    %p86 = por %p84, %p85
    %p87 = scmp.ne.s32.totalorder %s79, %s82
    %p88 = scmp.eq.s32.totalorder %s8, 0
    %p89 = por %p87, %p88
    %p90 = scmp.ne.s32.totalorder %s79, %s82
    %p91 = scmp.eq.s32.totalorder %s13, 1
    %p92 = por %p90, %p91
    %p93 = scmp.ne.s32.totalorder %s82, %s83
    %p94 = scmp.eq.s32.totalorder %s13, 0
    %p95 = por %p93, %p94
    %p96 = scmp.ne.s32.totalorder %s82, %s83
    %p97 = scmp.eq.s32.totalorder %s14, 1
    %p98 = por %p96, %p97
    %p100 = scmp.ne.s32.totalorder %s83, %s99
    %p101 = scmp.eq.s32.totalorder %s14, 0
    %p102 = por %p100, %p101
    %s103 = ssub.s32 %s15, %s34
    %s104 = ssub.s32 %s16, %s30
    %s105 = sor.u32 %s103, %s104
    %p106 = scmp.eq.s32.totalorder %s105, 0
    %s108 = sadd.s32 %s107, 1
    %s109 = scalar_select %p106, %s107, %s108
    %p112 = pneg %p106
    %p113 = scmp.eq.s32.totalorder %s8, 1
    %p114 = por %p112, %p113
    %p115 = scmp.ne.s32.totalorder %s107, %s110
    %p116 = scmp.eq.s32.totalorder %s8, 0
    %p117 = por %p115, %p116
    %p118 = scmp.ne.s32.totalorder %s107, %s110
    %p119 = scmp.eq.s32.totalorder %s13, 1
    %p120 = por %p118, %p119
    %p121 = scmp.ne.s32.totalorder %s110, %s111
    %p122 = scmp.eq.s32.totalorder %s13, 0
    %p123 = por %p121, %p122
    %p124 = scmp.ne.s32.totalorder %s110, %s111
    %p125 = scmp.eq.s32.totalorder %s14, 1
    %p126 = por %p124, %p125
    %p128 = scmp.ne.s32.totalorder %s111, %s127
    %p129 = scmp.eq.s32.totalorder %s14, 0
    %p130 = por %p128, %p129
    %p131 = scmp.le.s32.totalorder 1, %s8
    %p132 = scmp.lt.s32.totalorder %s8, 3
    %p133 = pnand %p131, %p132
    %p134 = pneg %p133
    // Predicated region
    $region9: #{focal_loss.1} parent=5 // pred_check
      _
    $region10: #{focal_loss.1} parent=5 // pred_check_branch
      %136 = sbr.rel (%p133) target = $region12
    $region11: #{focal_loss.1} parent=5 // pred_region
      %s137 = ssub.s32 %s8, 1
    $region12: #{focal_loss.1} parent=5 // pred_fallthru
      _
    %p138 = scmp.lt.s32.totalorder %s8, 2
    // Predicated region
    $region13: #{focal_loss.1} parent=5 // pred_check
      %p139 = pneg %p138
    $region14: #{focal_loss.1} parent=5 // pred_check_branch
      %141 = sbr.rel (%p139) target = $region16
    $region15: #{focal_loss.1} parent=5 // pred_region
      // Predicated region
      $region17: #{focal_loss.1} parent=15 // pred_check
        %p142 = pneg %p55
      $region18: #{focal_loss.1} parent=15 // pred_check_branch
        %144 = sbr.rel (%p142) target = $region20
      $region19: #{focal_loss.1} parent=15 // pred_region
        %s145 = sadd.s32 %s16, %s17
        %p146 = scmp.lt.s32.totalorder %s145, 0
        %s147 = scalar_select %p146, %s145, 0
        %p148 = scmp.lt.s32.totalorder %s15, 1
        %s149 = scalar_select %p148, %s15, 1
        %p150 = scmp.lt.s32.totalorder %s147, 0
        %s151 = scalar_select %p150, %s147, 0
        %s152 = smul.addr %s149, 4
        %s153 = sadd.s32 %s151, %s152
        %s154 = smul.addr %s153, 2
        %s155 = scalar_lea.vmem %s0, %s154
        %s156 = sadd.s32 %s16, %s17
        %p157 = scmp.lt.s32.totalorder %s156, 0
        %s158 = scalar_select %p157, %s156, 0
      $region20: #{focal_loss.1} parent=15 // pred_fallthru
        _
      // Predicated region
      $region21: #{focal_loss.1} parent=15 // pred_check
        %p159 = pneg %p89
      $region22: #{focal_loss.1} parent=15 // pred_check_branch
        %161 = sbr.rel (%p159) target = $region24
      $region23: #{focal_loss.1} parent=15 // pred_region
        %s162 = sadd.s32 %s16, %s17
        %p163 = scmp.lt.s32.totalorder %s162, 0
        %s164 = scalar_select %p163, %s162, 0
        %p165 = scmp.lt.s32.totalorder %s15, 1
        %s166 = scalar_select %p165, %s15, 1
        %p167 = scmp.lt.s32.totalorder %s164, 0
        %s168 = scalar_select %p167, %s164, 0
        %s169 = sadd.s32 %s168, %s166
        %s170 = smul.addr %s169, 2
        %s171 = scalar_lea.vmem %s1, %s170
        %s172 = sadd.s32 %s16, %s17
        %p173 = scmp.lt.s32.totalorder %s172, 0
        %s174 = scalar_select %p173, %s172, 0
      $region24: #{focal_loss.1} parent=15 // pred_fallthru
        _
    $region16: #{focal_loss.1} parent=5 // pred_fallthru
      _
    %p175 = scmp.le.s32.totalorder 1, %s8
    %p176 = scmp.lt.s32.totalorder %s8, 3
    %p177 = pnand %p175, %p176
    %p178 = pneg %p177
    // Predicated region
    $region25: #{focal_loss.1} parent=5 // pred_check
      _
    $region26: #{focal_loss.1} parent=5 // pred_check_branch
      %180 = sbr.rel (%p177) target = $region28
    $region27: #{focal_loss.1} parent=5 // pred_region
      %s181 = ssub.s32 %s8, 1
      %s182 = sadd.s32 %s19, %s20
      %p183 = scmp.lt.s32.totalorder %s182, 0
      %s184 = scalar_select %p183, %s182, 0
      %p185 = scmp.lt.s32.totalorder %s18, 1
      %s186 = scalar_select %p185, %s18, 1
      %p187 = scmp.lt.s32.totalorder %s184, 0
      %s188 = scalar_select %p187, %s184, 0
      %s189 = smul.addr %s186, 4
      %s190 = sadd.s32 %s188, %s189
      %s191 = smul.addr %s190, 2
      %s192 = scalar_lea.vmem %s0, %s191
      %p193 = pneg %p61
      %p194 = pneg %p58
      %s195 = sadd.s32 %s19, %s20
      %p196 = scmp.lt.s32.totalorder %s195, 0
      %s197 = scalar_select %p196, %s195, 0
      %p198 = scmp.lt.s32.totalorder %s18, 1
      %s199 = scalar_select %p198, %s18, 1
      %p200 = scmp.lt.s32.totalorder %s197, 0
      %s201 = scalar_select %p200, %s197, 0
      %s202 = sadd.s32 %s201, %s199
      %s203 = smul.addr %s202, 2
      %s204 = scalar_lea.vmem %s1, %s203
      %p205 = pneg %p95
      %p206 = pneg %p92
      %p207 = pneg %p123
      %p208 = pneg %p120
      %p209 = scmp.lt.s32.totalorder %s18, 1
      %s210 = scalar_select %p209, %s18, 1
      %p211 = scmp.lt.s32.totalorder %s19, 0
      %s212 = scalar_select %p211, %s19, 0
      %s213 = sadd.s32 %s212, %s210
      %s214 = smul.addr %s213, 8
      %s215 = scalar_lea.vmem %s2, %s214
      %s216 = sadd.s32 %s19, %s20
      %p217 = scmp.lt.s32.totalorder %s216, 0
      %s218 = scalar_select %p217, %s216, 0
      %p219 = scmp.lt.s32.totalorder %s18, 1
      %s220 = scalar_select %p219, %s18, 1
      %p221 = scmp.lt.s32.totalorder %s218, 0
      %s222 = scalar_select %p221, %s218, 0
      %s223 = smul.addr %s220, 4
      %s224 = sadd.s32 %s222, %s223
      %s225 = smul.addr %s224, 2
      %s226 = scalar_lea.vmem %s0, %s225
      %s227 = sadd.s32 %s19, %s20
      %p228 = scmp.lt.s32.totalorder %s227, 0
      %s229 = scalar_select %p228, %s227, 0
      %s230 = sadd.s32 %s19, %s20
      %p231 = scmp.lt.s32.totalorder %s230, 0
      %s232 = scalar_select %p231, %s230, 0
      %p233 = scmp.lt.s32.totalorder %s18, 1
      %s234 = scalar_select %p233, %s18, 1
      %p235 = scmp.lt.s32.totalorder %s232, 0
      %s236 = scalar_select %p235, %s232, 0
      %s237 = sadd.s32 %s236, %s234
      %s238 = smul.addr %s237, 2
      %s239 = scalar_lea.vmem %s1, %s238
      %s240 = sadd.s32 %s19, %s20
      %p241 = scmp.lt.s32.totalorder %s240, 0
      %s242 = scalar_select %p241, %s240, 0
      %p243 = scmp.lt.s32.totalorder %s18, 1
      %s244 = scalar_select %p243, %s18, 1
      %p245 = scmp.lt.s32.totalorder %s19, 0
      %s246 = scalar_select %p245, %s19, 0
      %s247 = sadd.s32 %s246, %s244
      %s248 = smul.addr %s247, 8
      %s249 = scalar_lea.vmem %s2, %s248
      %p250 = scmp.eq.s32.totalorder %s20, 0
      // Predicated region
      $region29: #{focal_loss.1} parent=27 // pred_check
        %p251 = pneg %p250
      $region30: #{focal_loss.1} parent=27 // pred_check_branch
        %253 = sbr.rel (%p251) target = $region32
      $region31: #{focal_loss.1} parent=27 // pred_region
        %254 = vst [vmem:[#allocation2] sm:$0x3] 0.0
      $region32: #{focal_loss.1} parent=27 // pred_fallthru
        _
      %v255 = vld [vmem:[%s239] sm:$0x3]
      %s256 = sadd.s32 %s19, %s20
      %s257 = smul.u32 %s256, 2
      %v258 = vlaneseq
      %v259 = vshrl.u32 %v258, 7
      %v260 = vlaneseq
      %v261 = vand.u32 %v260, 127
      %v262 = vstv %s257
      %v263 = vadd.s32 %v262, %v259
      %v264 = vmul.u32 %v263, 128
      %v265 = vadd.s32 %v264, %v261
      %vm266 = vcmp.lt.s32.totalorder %v265, 256
      %vm267 = vcmp.ne.s32.totalorder %v255, 255
      %vm268 = vmand %vm266, %vm267
      %v269 = vld [vmem:[%s226] sm:$0x3]
      %s270 = scalar_lea.vmem %s226, 2
      %v271 = vld [vmem:[%s270] sm:$0x3]
      %v272 = vmax.f32 %v269, %v271
      %s273 = scalar_lea.vmem %s226, 4
      %v274 = vld [vmem:[%s273] sm:$0x3]
      %v275 = vmax.f32 %v272, %v274
      %s276 = scalar_lea.vmem %s226, 6
      %v277 = vld [vmem:[%s276] sm:$0x3]
      %v278 = vmax.f32 %v275, %v277
      %v279 = vsub.f32 %v269, %v278
      %v280 = vmul.f32 %v279, 1.442695
      %v281 = vpow.pop %v280
      %v282 = vadd.f32 %v281, 0.0
      %vm283 = vcmp.eq.s32.totalorder %v255, 0
      %v284 = vsel %vm283, %v269, 0.0
      %v285 = vsel %vm283, %v281, 0.0
      %v286 = vsub.f32 %v271, %v278
      %v287 = vmul.f32 %v286, 1.442695
      %v288 = vpow.pop %v287
      %v289 = vadd.f32 %v282, %v288
      %vm290 = vcmp.eq.s32.totalorder %v255, 1
      %v291 = vsel %vm290, %v271, %v284
      %v292 = vsel %vm290, %v288, %v285
      %v293 = vsub.f32 %v274, %v278
      %v294 = vmul.f32 %v293, 1.442695
      %v295 = vpow.pop %v294
      %v296 = vadd.f32 %v289, %v295
      %vm297 = vcmp.eq.s32.totalorder %v255, 2
      %v298 = vsel %vm297, %v274, %v291
      %v299 = vsel %vm297, %v295, %v292
      %v300 = vsub.f32 %v277, %v278
      %v301 = vmul.f32 %v300, 1.442695
      %v302 = vpow.pop %v301
      %v303 = vadd.f32 %v296, %v302
      %vm304 = vcmp.eq.s32.totalorder %v255, 3
      %v305 = vsel %vm304, %v277, %v298
      %v306 = vsel %vm304, %v302, %v299
      %v307 = vlog2.pop %v303
      %v308 = vmul.f32 %v307, 0.6931472
      %v309 = vadd.f32 %v278, %v308
      %v310 = vsub.f32 %v309, %v305
      %v311 = vrcp.pop %v303
      %v312 = vmul.f32 %v306, %v311
      %v313 = vsub.f32 1.0, %v312
      %v314 = vmul.f32 %v313, %v313
      %v315 = vmul.f32 %v314, %v310
      %v316 = vld [vmem:[#allocation2] sm:$0x3]
      %v317 = vsel %vm268, %v315, 0.0
      %v318 = vadd.f32 %v316, %v317
      %319 = vst [vmem:[#allocation2] sm:$0x3] %v318
      // Predicated region
      $region33: #{focal_loss.1} parent=27 // pred_check
        %p320 = pneg %p250
      $region34: #{focal_loss.1} parent=27 // pred_check_branch
        %322 = sbr.rel (%p320) target = $region36
      $region35: #{focal_loss.1} parent=27 // pred_region
        %v323 = vld [vmem:[#allocation2] sm:$0x3]
        %vm324 = vcmask 1041408
        %v325 = vsel %vm324, %v323, 0.0
        %326 = vadd.xlane.f32.xlu0 %v325
        %v327 = vpop.xlane.xlu0 %326
        %v328 = vrot.slane %v327, 4
        %v329 = vadd.f32 %v327, %v328
        %v330 = vrot.slane %v329, 2
        %v331 = vadd.f32 %v329, %v330
        %v332 = vrot.slane %v331, 1
        %v333 = vadd.f32 %v331, %v332
        %s334 = vtos %v333
        %v335 = vstv %s334
        %336 = vst [vmem:[%s249] sm:$0xff] %v335
      $region36: #{focal_loss.1} parent=27 // pred_fallthru
        _
      %p337 = scmp.lt.s32.totalorder %s18, 1
      %s338 = scalar_select %p337, %s18, 1
      %p339 = scmp.lt.s32.totalorder %s19, 0
      %s340 = scalar_select %p339, %s19, 0
      %s341 = sadd.s32 %s340, %s338
      %s342 = smul.addr %s341, 8
      %s343 = scalar_lea.vmem %s2, %s342
      // Predicated region
      $region37: #{focal_loss.1} parent=27 // pred_check
        %p344 = pneg %p120
      $region38: #{focal_loss.1} parent=27 // pred_check_branch
        %346 = sbr.rel (%p344) target = $region40
      $region39: #{focal_loss.1} parent=27 // pred_region
        _
      $region40: #{focal_loss.1} parent=27 // pred_fallthru
        _
    $region28: #{focal_loss.1} parent=5 // pred_fallthru
      _
    %p347 = scmp.le.s32.totalorder 2, %s8
    // Predicated region
    $region41: #{focal_loss.1} parent=5 // pred_check
      %p348 = pneg %p347
    $region42: #{focal_loss.1} parent=5 // pred_check_branch
      %350 = sbr.rel (%p348) target = $region44
    $region43: #{focal_loss.1} parent=5 // pred_region
      %s351 = ssub.s32 %s8, 2
      // Predicated region
      $region45: #{focal_loss.1} parent=43 // pred_check
        %p352 = pneg %p126
      $region46: #{focal_loss.1} parent=43 // pred_check_branch
        %354 = sbr.rel (%p352) target = $region48
      $region47: #{focal_loss.1} parent=43 // pred_region
        %p355 = scmp.lt.s32.totalorder %s21, 1
        %s356 = scalar_select %p355, %s21, 1
        %p357 = scmp.lt.s32.totalorder %s22, 0
        %s358 = scalar_select %p357, %s22, 0
        %s359 = sadd.s32 %s358, %s356
        %s360 = smul.addr %s359, 8
        %s361 = scalar_lea.vmem %s2, %s360
      $region48: #{focal_loss.1} parent=43 // pred_fallthru
        _
    $region44: #{focal_loss.1} parent=5 // pred_fallthru
      _
  $region6: #{focal_loss.1} parent=0 // loop_footer
    %s12 = sadd.s32 1, %s8
  $region7: #{focal_loss.1} parent=0 // loop_footer_branch
    %7 = sbr.rel target = $region3
  $region8: #{focal_loss.1} parent=0 // loop_exit
    _

</llo_original>
